<compile_context>
chip_gen: v5e
topology: v5e:2x2
jax: 0.10.0
libtpu: 0.0.40
codegen_flags: <defaults>
</compile_context>

<pallas_src>
import functools

import jax
import jax.numpy as jnp
from jax.experimental import pallas as pl
from jax.experimental.pallas import tpu as pltpu


# ----------------------------- kernels ------------------------------------


def _linear_kernel_fullk(x_ref, w_ref, b_ref, o_ref):
    # 2-D grid: one MXU matmul over the whole K strip, bias added once.
    o_ref[...] = (
        jnp.dot(x_ref[...], w_ref[...], preferred_element_type=jnp.float32)
        + b_ref[...]
    ).astype(o_ref.dtype)


def _linear_kernel_kacc(x_ref, w_ref, b_ref, o_ref):
    # 3-D grid (i, j, k): accumulate directly into the f32 output block, which
    # is VMEM-resident across the K sweep (its index_map ignores k).
    k = pl.program_id(2)

    @pl.when(k == 0)
    def _():
        o_ref[...] = jnp.zeros_like(o_ref)

    o_ref[...] += jnp.dot(x_ref[...], w_ref[...], preferred_element_type=jnp.float32)

    @pl.when(k == pl.num_programs(2) - 1)
    def _():
        o_ref[...] += b_ref[...]  # bias added exactly once, in the epilogue


# ----------------------------- helpers ------------------------------------


def _round_up(x, m):
    return ((x + m - 1) // m) * m


def _largest_aligned_divisor(size, target, align):
    """Largest divisor of `size` that is a multiple of `align` and <= `target`."""
    if size <= target:
        return size
    for cand in range(target, align - 1, -align):
        if size % cand == 0:
            return cand
    return align


def _pick_tile(size_aligned, target, align):
    """Prefer a tile that exactly divides the aligned size (no extra padding);
    fall back to the full target tile (pad up) only if the best divisor is tiny."""
    d = _largest_aligned_divisor(size_aligned, target, align)
    if d * 4 < target:
        return target  # pad-up fallback: wastes < one tile, keeps tiles big
    return d


def _vmem_bytes(tm, tn, tk, itemsize_in, n_buf_in=2):
    x_bytes = n_buf_in * tm * tk * itemsize_in
    w_bytes = n_buf_in * tk * tn * itemsize_in
    o_bytes = 2 * tm * tn * 4          # f32 output block, double-buffered over (i, j)
    b_bytes = 2 * tn * 4               # bias slice
    return int(1.15 * (x_bytes + w_bytes + o_bytes + b_bytes))


# ----------------------------- wrapper ------------------------------------


@functools.partial(jax.jit, static_argnames=("tm", "tn", "tk", "use_bf16"))
def linear_forward(x, w, b, *, tm=512, tn=512, tk=1024, use_bf16=False):
    """x: (B, in_dim) f32, w: (in_dim, out_dim), b: (1, out_dim) -> (B, out_dim) f32."""
    B, K = x.shape
    K2, N = w.shape
    assert K == K2 and b.shape == (1, N)

    out_dtype = jnp.float32  # accumulate-into-o_ref requires an f32 output
    in_dtype = jnp.bfloat16 if use_bf16 else x.dtype
    itemsize_in = jnp.dtype(in_dtype).itemsize

    # --- generation-aware VMEM budget (v5e/v6e: 128 MiB, v7x: 64 MiB) -----
    try:
        info = pltpu.get_tpu_info()
        vmem_cap = int(getattr(info, "vmem_capacity_bytes", 64 * 1024 * 1024))
    except Exception:  # pragma: no cover - fallback when query unavailable
        vmem_cap = 64 * 1024 * 1024
    vmem_budget = min(int(0.75 * vmem_cap), 100 * 1024 * 1024)

    # --- tile selection: pad only to (8, 128) alignment when possible -----
    B8 = _round_up(B, 8)
    K128 = _round_up(K, 128)
    N128 = _round_up(N, 128)

    tm_t = max(8, _round_up(tm, 8))
    tn_t = max(128, _round_up(tn, 128))
    tk_t = max(128, _round_up(tk, 128))

    tm = _pick_tile(B8, tm_t, 8)
    tn = _pick_tile(N128, tn_t, 128)
    # Full-K strip whenever it is small enough to hold double-buffered in VMEM.
    tk = K128 if K128 <= 4096 else _pick_tile(K128, tk_t, 128)

    # --- hard VMEM budget check: shrink tk first, then tn, then tm --------
    while _vmem_bytes(tm, tn, tk, itemsize_in) > vmem_budget and tk > 128:
        tk = max(128, _round_up(tk // 2, 128))
    while _vmem_bytes(tm, tn, tk, itemsize_in) > vmem_budget and tn > 128:
        tn = max(128, _round_up(tn // 2, 128))
    while _vmem_bytes(tm, tn, tk, itemsize_in) > vmem_budget and tm > 8:
        tm = max(8, _round_up(tm // 2, 8))

    Bp = _round_up(B8, tm)
    Np = _round_up(N128, tn)
    Kp = _round_up(K128, tk)
    full_k = Kp == tk

    # --- megacore occupancy: keep >=2 parallel blocks for non-tiny problems
    if (Bp // tm) * (Np // tn) < 2 and Bp * Np >= 256 * 512:
        if tn % 256 == 0:
            tn //= 2
        elif tm % 16 == 0:
            tm //= 2

    grid_m, grid_n = Bp // tm, Np // tn
    n_k_tiles = Kp // tk

    # --- pad (trace-time no-op when already aligned; pre-pad W/b for serving)
    xp = x if (Bp == B and Kp == K) else jnp.pad(x, ((0, Bp - B), (0, Kp - K)))
    wp = w if (Kp == K and Np == N) else jnp.pad(w, ((0, Kp - K), (0, Np - N)))
    bp = b if Np == N else jnp.pad(b, ((0, 0), (0, Np - N)))
    if use_bf16:
        xp = xp.astype(jnp.bfloat16)
        wp = wp.astype(jnp.bfloat16)

    # --- deeper input buffering when the K sweep is very short -------------
    buf_count = 3 if (not full_k and 2 <= n_k_tiles <= 3) else None
    buffered_cls = getattr(pl, "Buffered", None)

    def _in_spec(shape, index_map):
        if buf_count is not None and buffered_cls is not None:
            try:
                return pl.BlockSpec(shape, index_map,
                                    pipeline_mode=buffered_cls(buf_count))
            except TypeError:
                pass
        return pl.BlockSpec(shape, index_map)

    # --- truthful bytes estimate (inputs are re-streamed per output strip) -
    cost = pl.CostEstimate(
        flops=2 * B * K * N,
        transcendentals=0,
        bytes_accessed=int(
            itemsize_in * (Kp * Np * grid_m + Bp * Kp * grid_n) + 4 * Bp * Np
        ),
    )

    n_buf = buf_count or 2
    vmem_needed = _vmem_bytes(tm, tn, tk, itemsize_in, n_buf)
    vmem_limit = max(vmem_needed, 32 * 1024 * 1024)
    vmem_limit = min(vmem_limit, int(0.9 * vmem_cap))

    if full_k:
        out = pl.pallas_call(
            _linear_kernel_fullk,
            out_shape=jax.ShapeDtypeStruct((Bp, Np), out_dtype),
            grid_spec=pltpu.PrefetchScalarGridSpec(
                num_scalar_prefetch=0,
                grid=(grid_m, grid_n),
                in_specs=[
                    pl.BlockSpec((tm, Kp), lambda i, j: (i, 0)),
                    pl.BlockSpec((Kp, tn), lambda i, j: (0, j)),
                    pl.BlockSpec((1, tn), lambda i, j: (0, j)),
                ],
                out_specs=pl.BlockSpec((tm, tn), lambda i, j: (i, j)),
            ),
            compiler_params=pltpu.CompilerParams(
                dimension_semantics=("parallel", "parallel"),
                vmem_limit_bytes=vmem_limit,
            ),
            cost_estimate=cost,
        )(xp, wp, bp)
    else:
        out = pl.pallas_call(
            _linear_kernel_kacc,
            out_shape=jax.ShapeDtypeStruct((Bp, Np), out_dtype),
            grid_spec=pltpu.PrefetchScalarGridSpec(
                num_scalar_prefetch=0,
                grid=(grid_m, grid_n, n_k_tiles),
                in_specs=[
                    _in_spec((tm, tk), lambda i, j, k: (i, k)),
                    _in_spec((tk, tn), lambda i, j, k: (k, j)),
                    pl.BlockSpec((1, tn), lambda i, j, k: (0, j)),
                ],
                out_specs=pl.BlockSpec((tm, tn), lambda i, j, k: (i, j)),
            ),
            compiler_params=pltpu.CompilerParams(
                dimension_semantics=("parallel", "parallel", "arbitrary"),
                vmem_limit_bytes=vmem_limit,
            ),
            cost_estimate=cost,
        )(xp, wp, bp)

    return out[:B, :N]


if __name__ == "__main__":
    # Small shapes consistent with LinearModel(in_dim, out_dim) on a batch of vectors.
    # NOTE: at these toy sizes the kernel hits the full-K 2-D fast path (single
    # grid step); the tiled 3-D path is exercised for K/B/N in the hundreds+.
    batch, in_dim, out_dim = 8, 32, 16

    key = jax.random.PRNGKey(0)
    kx, kw, kb = jax.random.split(key, 3)

    # Deterministic param init mirroring nn.Linear's uniform(-1/sqrt(in), 1/sqrt(in)).
    bound = 1.0 / jnp.sqrt(jnp.float32(in_dim))
    # PyTorch stores weight as (out_dim, in_dim); transpose once outside the
    # per-call path (for serving, also pre-pad W/b to 128-aligned dims so the
    # in-call jnp.pad is a trace-time no-op).
    w_torch_layout = jax.random.uniform(
        kw, (out_dim, in_dim), dtype=jnp.float32, minval=-bound, maxval=bound
    )
    w = jnp.transpose(w_torch_layout)  # (in_dim, out_dim)
    b = jax.random.uniform(
        kb, (1, out_dim), dtype=jnp.float32, minval=-bound, maxval=bound
    )

    x = jax.random.normal(kx, (batch, in_dim), dtype=jnp.float32)

    y = linear_forward(x, w, b)
    jax.block_until_ready(y)

    # Reference check in plain JAX (same math as torch.nn.Linear, f32 path).
    y_ref = x @ w + b
    assert y.shape == (batch, out_dim)
    assert jnp.allclose(y, y_ref, atol=1e-5, rtol=1e-5)

    print("KERNEL_OK")
</pallas_src>

<mosaic_0001>
module attributes {stable_mosaic.version = 11 : i64} {
  func.func @_linear_kernel_fullk(%arg0: i32, %arg1: i32, %arg2: memref<512x128xf32, #tpu.memory_space<vmem>>, %arg3: memref<128x128xf32, #tpu.memory_space<vmem>>, %arg4: memref<1x128xf32, #tpu.memory_space<vmem>>, %arg5: memref<512x128xf32, #tpu.memory_space<vmem>>) attributes {dimension_semantics = [#tpu.dimension_semantics<parallel>, #tpu.dimension_semantics<parallel>], iteration_bounds = array<i64: 1, 1>, scalar_prefetch = 0 : i64, scratch_operands = 0 : i64, tpu.core_type = #tpu.core_type<tc>, window_params = [{transform_indices = @transform_0, window_bounds = array<i64: 512, 128>}, {transform_indices = @transform_1, window_bounds = array<i64: 128, 128>}, {transform_indices = @transform_2, window_bounds = array<i64: 1, 128>}, {transform_indices = @transform_3, window_bounds = array<i64: 512, 128>}]} {
    %c0 = arith.constant 0 : index
    %c0_0 = arith.constant 0 : index
    %0 = vector.load %arg2[%c0, %c0_0] : memref<512x128xf32, #tpu.memory_space<vmem>>, vector<512x128xf32>
    %c0_1 = arith.constant 0 : index
    %c0_2 = arith.constant 0 : index
    %1 = vector.load %arg3[%c0_1, %c0_2] : memref<128x128xf32, #tpu.memory_space<vmem>>, vector<128x128xf32>
    %cst = arith.constant dense<0.000000e+00> : vector<512x128xf32>
    %2 = tpu.matmul %0, %1, %cst {dimension_numbers = #tpu.dot_dimension_numbers<[1], [0], [0], [1], [0, 0, 1, 1], [], []>} : vector<512x128xf32>, vector<128x128xf32>, vector<512x128xf32> -> vector<512x128xf32>
    %c0_3 = arith.constant 0 : index
    %c0_4 = arith.constant 0 : index
    %3 = vector.load %arg4[%c0_3, %c0_4] : memref<1x128xf32, #tpu.memory_space<vmem>>, vector<1x128xf32>
    %4 = vector.broadcast %3 : vector<1x128xf32> to vector<512x128xf32>
    %5 = arith.addf %2, %4 : vector<512x128xf32>
    %c0_5 = arith.constant 0 : index
    %c0_6 = arith.constant 0 : index
    %6 = vector.load %arg5[%c0_5, %c0_6] : memref<512x128xf32, #tpu.memory_space<vmem>>, vector<512x128xf32>
    tpu.vector_store %arg5[%c0_5, %c0_6], %5 {strides = array<i32>} : memref<512x128xf32, #tpu.memory_space<vmem>>, vector<512x128xf32>,
    return
  }
  func.func @transform_0(%arg0: i32, %arg1: i32) -> (i32, i32) {
    %c0_i32 = arith.constant 0 : i32
    %c0_i32_0 = arith.constant 0 : i32
    return %arg0, %c0_i32 : i32, i32
  }
  func.func @transform_1(%arg0: i32, %arg1: i32) -> (i32, i32) {
    %c0_i32 = arith.constant 0 : i32
    %c0_i32_0 = arith.constant 0 : i32
    return %c0_i32, %arg1 : i32, i32
  }
  func.func @transform_2(%arg0: i32, %arg1: i32) -> (i32, i32) {
    %c0_i32 = arith.constant 0 : i32
    %c0_i32_0 = arith.constant 0 : i32
    return %c0_i32, %arg1 : i32, i32
  }
  func.func @transform_3(%arg0: i32, %arg1: i32) -> (i32, i32) {
    %c0_i32 = arith.constant 0 : i32
    return %arg0, %arg1 : i32, i32
  }
}

</mosaic_0001>

<llo_original>
// kernel: linear_forward.1
$region0: #{linear_forward.1}
  #allocation0 [shape = 'u32[]', space=smem, size = 0x4, offset = 0x4, fixed_abs, tag = 'smem constant byte address 0x4 - core index']
  #allocation1 [shape = 'u32[72,128]{1,0:T(1,128)}', space=vmem, size = 0x9000, scoped, tag = 'internal scratch']
  %s0 = inlined_call_operand.vmem [shape: f32[512,128], index: 0, kind: input, shape index: {}]
  %s1 = inlined_call_operand.vmem [shape: f32[128,128], index: 1, kind: input, shape index: {}]
  %s2 = inlined_call_operand.vmem [shape: f32[1,128], index: 2, kind: input, shape index: {}]
  %s3 = inlined_call_operand.vmem [shape: f32[512,128], index: 3, kind: output, shape index: {}]
  %s4 = sld [smem:[#allocation0]]
  $region22: #{linear_forward.1} parent=0
    _
  %s6 = ssub.s32 1, %s4
  %s7 = scalar_select 0, %s6, %s4
  // Predicated region
  $region2: #{linear_forward.1} parent=0 // pred_check
    _
  $region3: #{linear_forward.1} parent=0 // pred_check_branch
    %9 = sbr.rel (0) target = $region5
  $region4: #{linear_forward.1} parent=0 // pred_region
    _
  $region5: #{linear_forward.1} parent=0 // pred_fallthru
    _
  // Predicated region
  $region6: #{linear_forward.1} parent=0 // pred_check
    _
  $region7: #{linear_forward.1} parent=0 // pred_check_branch
    %11 = sbr.rel (0) target = $region9
  $region8: #{linear_forward.1} parent=0 // pred_region
    _
  $region9: #{linear_forward.1} parent=0 // pred_fallthru
    _
  // Predicated region
  $region10: #{linear_forward.1} parent=0 // pred_check
    _
  $region11: #{linear_forward.1} parent=0 // pred_check_branch
    %13 = sbr.rel (0) target = $region13
  $region12: #{linear_forward.1} parent=0 // pred_region
    _
  $region13: #{linear_forward.1} parent=0 // pred_fallthru
    _
  %v14 = vld [vmem:[%s0] sm:$0xff]
  %v15 = vld [vmem:[%s0 + $0x8] sm:$0xff]
  %v16 = vld [vmem:[%s0 + $0x10] sm:$0xff]
  %v17 = vld [vmem:[%s0 + $0x18] sm:$0xff]
  %v18 = vld [vmem:[%s0 + $0x20] sm:$0xff]
  %v19 = vld [vmem:[%s0 + $0x28] sm:$0xff]
  %v20 = vld [vmem:[%s0 + $0x30] sm:$0xff]
  %v21 = vld [vmem:[%s0 + $0x38] sm:$0xff]
  %v22 = vld [vmem:[%s0 + $0x40] sm:$0xff]
  %v23 = vld [vmem:[%s0 + $0x48] sm:$0xff]
  %v24 = vld [vmem:[%s0 + $0x50] sm:$0xff]
  %v25 = vld [vmem:[%s0 + $0x58] sm:$0xff]
  %v26 = vld [vmem:[%s0 + $0x60] sm:$0xff]
  %v27 = vld [vmem:[%s0 + $0x68] sm:$0xff]
  %v28 = vld [vmem:[%s0 + $0x70] sm:$0xff]
  %v29 = vld [vmem:[%s0 + $0x78] sm:$0xff]
  %v30 = vld [vmem:[%s0 + $0x80] sm:$0xff]
  %v31 = vld [vmem:[%s0 + $0x88] sm:$0xff]
  %v32 = vld [vmem:[%s0 + $0x90] sm:$0xff]
  %v33 = vld [vmem:[%s0 + $0x98] sm:$0xff]
  %v34 = vld [vmem:[%s0 + $0xa0] sm:$0xff]
  %v35 = vld [vmem:[%s0 + $0xa8] sm:$0xff]
  %v36 = vld [vmem:[%s0 + $0xb0] sm:$0xff]
  %v37 = vld [vmem:[%s0 + $0xb8] sm:$0xff]
  %v38 = vld [vmem:[%s0 + $0xc0] sm:$0xff]
  %v39 = vld [vmem:[%s0 + $0xc8] sm:$0xff]
  %v40 = vld [vmem:[%s0 + $0xd0] sm:$0xff]
  %v41 = vld [vmem:[%s0 + $0xd8] sm:$0xff]
  %v42 = vld [vmem:[%s0 + $0xe0] sm:$0xff]
  %v43 = vld [vmem:[%s0 + $0xe8] sm:$0xff]
  %v44 = vld [vmem:[%s0 + $0xf0] sm:$0xff]
  %v45 = vld [vmem:[%s0 + $0xf8] sm:$0xff]
  %v46 = vld [vmem:[%s0 + $0x100] sm:$0xff]
  %v47 = vld [vmem:[%s0 + $0x108] sm:$0xff]
  %v48 = vld [vmem:[%s0 + $0x110] sm:$0xff]
  %v49 = vld [vmem:[%s0 + $0x118] sm:$0xff]
  %v50 = vld [vmem:[%s0 + $0x120] sm:$0xff]
  %v51 = vld [vmem:[%s0 + $0x128] sm:$0xff]
  %v52 = vld [vmem:[%s0 + $0x130] sm:$0xff]
  %v53 = vld [vmem:[%s0 + $0x138] sm:$0xff]
  %v54 = vld [vmem:[%s0 + $0x140] sm:$0xff]
  %v55 = vld [vmem:[%s0 + $0x148] sm:$0xff]
  %v56 = vld [vmem:[%s0 + $0x150] sm:$0xff]
  %v57 = vld [vmem:[%s0 + $0x158] sm:$0xff]
  %v58 = vld [vmem:[%s0 + $0x160] sm:$0xff]
  %v59 = vld [vmem:[%s0 + $0x168] sm:$0xff]
  %v60 = vld [vmem:[%s0 + $0x170] sm:$0xff]
  %v61 = vld [vmem:[%s0 + $0x178] sm:$0xff]
  %v62 = vld [vmem:[%s0 + $0x180] sm:$0xff]
  %v63 = vld [vmem:[%s0 + $0x188] sm:$0xff]
  %v64 = vld [vmem:[%s0 + $0x190] sm:$0xff]
  %v65 = vld [vmem:[%s0 + $0x198] sm:$0xff]
  %v66 = vld [vmem:[%s0 + $0x1a0] sm:$0xff]
  %v67 = vld [vmem:[%s0 + $0x1a8] sm:$0xff]
  %v68 = vld [vmem:[%s0 + $0x1b0] sm:$0xff]
  %v69 = vld [vmem:[%s0 + $0x1b8] sm:$0xff]
  %v70 = vld [vmem:[%s0 + $0x1c0] sm:$0xff]
  %v71 = vld [vmem:[%s0 + $0x1c8] sm:$0xff]
  %v72 = vld [vmem:[%s0 + $0x1d0] sm:$0xff]
  %v73 = vld [vmem:[%s0 + $0x1d8] sm:$0xff]
  %v74 = vld [vmem:[%s0 + $0x1e0] sm:$0xff]
  %v75 = vld [vmem:[%s0 + $0x1e8] sm:$0xff]
  %v76 = vld [vmem:[%s0 + $0x1f0] sm:$0xff]
  %v77 = vld [vmem:[%s0 + $0x1f8] sm:$0xff]
  %v78 = vld [vmem:[%s1] sm:$0xff]
  %v79 = vld [vmem:[%s1 + $0x8] sm:$0xff]
  %v80 = vld [vmem:[%s1 + $0x10] sm:$0xff]
  %v81 = vld [vmem:[%s1 + $0x18] sm:$0xff]
  %v82 = vld [vmem:[%s1 + $0x20] sm:$0xff]
  %v83 = vld [vmem:[%s1 + $0x28] sm:$0xff]
  %v84 = vld [vmem:[%s1 + $0x30] sm:$0xff]
  %v85 = vld [vmem:[%s1 + $0x38] sm:$0xff]
  %v86 = vld [vmem:[%s1 + $0x40] sm:$0xff]
  %v87 = vld [vmem:[%s1 + $0x48] sm:$0xff]
  %v88 = vld [vmem:[%s1 + $0x50] sm:$0xff]
  %v89 = vld [vmem:[%s1 + $0x58] sm:$0xff]
  %v90 = vld [vmem:[%s1 + $0x60] sm:$0xff]
  %v91 = vld [vmem:[%s1 + $0x68] sm:$0xff]
  %v92 = vld [vmem:[%s1 + $0x70] sm:$0xff]
  %v93 = vld [vmem:[%s1 + $0x78] sm:$0xff]
  %v94 = vld [vmem:[%s2] sm:$0x1]
  %v96 = vperm.slane %v94, 0
  %98 = vmatpush.msra.mxu0 %v93
  %99 = vmatpush.msra.mxu0 %v92
  %100 = vmatpush.msra.mxu0 %v91
  %101 = vmatpush.msra.mxu0 %v90
  %102 = vmatpush.msra.mxu0 %v89
  %103 = vmatpush.msra.mxu0 %v88
  %104 = vmatpush.msra.mxu0 %v87
  %105 = vmatpush.msra.mxu0 %v86
  %106 = vmatpush.msra.mxu0 %v85
  %107 = vmatpush.msra.mxu0 %v84
  %108 = vmatpush.msra.mxu0 %v83
  %109 = vmatpush.msra.mxu0 %v82
  %110 = vmatpush.msra.mxu0 %v81
  %111 = vmatpush.msra.mxu0 %v80
  %112 = vmatpush.msra.mxu0 %v79
  %113 = vmatpush.msra.mxu0 %v78
  %114 = vmatmul.f32.gmra.mxu0 %v14
  %v115 = vpop.f32.mrf.mxu0
  %v116 = vadd.f32 %v96, %v115
  %117 = vmatmul.f32.gmra.mxu0 %v15
  %v118 = vpop.f32.mrf.mxu0
  %v119 = vadd.f32 %v96, %v118
  %120 = vmatmul.f32.gmra.mxu0 %v16
  %v121 = vpop.f32.mrf.mxu0
  %v122 = vadd.f32 %v96, %v121
  %123 = vmatmul.f32.gmra.mxu0 %v17
  %v124 = vpop.f32.mrf.mxu0
  %v125 = vadd.f32 %v96, %v124
  %126 = vmatmul.f32.gmra.mxu0 %v18
  %v127 = vpop.f32.mrf.mxu0
  %v128 = vadd.f32 %v96, %v127
  %129 = vmatmul.f32.gmra.mxu0 %v19
  %v130 = vpop.f32.mrf.mxu0
  %v131 = vadd.f32 %v96, %v130
  %132 = vmatmul.f32.gmra.mxu0 %v20
  %v133 = vpop.f32.mrf.mxu0
  %v134 = vadd.f32 %v96, %v133
  %135 = vmatmul.f32.gmra.mxu0 %v21
  %v136 = vpop.f32.mrf.mxu0
  %v137 = vadd.f32 %v96, %v136
  %138 = vmatmul.f32.gmra.mxu0 %v22
  %v139 = vpop.f32.mrf.mxu0
  %v140 = vadd.f32 %v96, %v139
  %141 = vmatmul.f32.gmra.mxu0 %v23
  %v142 = vpop.f32.mrf.mxu0
  %v143 = vadd.f32 %v96, %v142
  %144 = vmatmul.f32.gmra.mxu0 %v24
  %v145 = vpop.f32.mrf.mxu0
  %v146 = vadd.f32 %v96, %v145
  %147 = vmatmul.f32.gmra.mxu0 %v25
  %v148 = vpop.f32.mrf.mxu0
  %v149 = vadd.f32 %v96, %v148
  %150 = vmatmul.f32.gmra.mxu0 %v26
  %v151 = vpop.f32.mrf.mxu0
  %v152 = vadd.f32 %v96, %v151
  %153 = vmatmul.f32.gmra.mxu0 %v27
  %v154 = vpop.f32.mrf.mxu0
  %v155 = vadd.f32 %v96, %v154
  %156 = vmatmul.f32.gmra.mxu0 %v28
  %v157 = vpop.f32.mrf.mxu0
  %v158 = vadd.f32 %v96, %v157
  %159 = vmatmul.f32.gmra.mxu0 %v29
  %v160 = vpop.f32.mrf.mxu0
  %v161 = vadd.f32 %v96, %v160
  %162 = vmatmul.f32.gmra.mxu0 %v30
  %v163 = vpop.f32.mrf.mxu0
  %v164 = vadd.f32 %v96, %v163
  %165 = vmatmul.f32.gmra.mxu0 %v31
  %v166 = vpop.f32.mrf.mxu0
  %v167 = vadd.f32 %v96, %v166
  %168 = vmatmul.f32.gmra.mxu0 %v32
  %v169 = vpop.f32.mrf.mxu0
  %v170 = vadd.f32 %v96, %v169
  %171 = vmatmul.f32.gmra.mxu0 %v33
  %v172 = vpop.f32.mrf.mxu0
  %v173 = vadd.f32 %v96, %v172
  %174 = vmatmul.f32.gmra.mxu0 %v34
  %v175 = vpop.f32.mrf.mxu0
  %v176 = vadd.f32 %v96, %v175
  %177 = vmatmul.f32.gmra.mxu0 %v35
  %v178 = vpop.f32.mrf.mxu0
  %v179 = vadd.f32 %v96, %v178
  %180 = vmatmul.f32.gmra.mxu0 %v36
  %v181 = vpop.f32.mrf.mxu0
  %v182 = vadd.f32 %v96, %v181
  %183 = vmatmul.f32.gmra.mxu0 %v37
  %v184 = vpop.f32.mrf.mxu0
  %v185 = vadd.f32 %v96, %v184
  %186 = vmatmul.f32.gmra.mxu0 %v38
  %v187 = vpop.f32.mrf.mxu0
  %v188 = vadd.f32 %v96, %v187
  %189 = vmatmul.f32.gmra.mxu0 %v39
  %v190 = vpop.f32.mrf.mxu0
  %v191 = vadd.f32 %v96, %v190
  %192 = vmatmul.f32.gmra.mxu0 %v40
  %v193 = vpop.f32.mrf.mxu0
  %v194 = vadd.f32 %v96, %v193
  %195 = vmatmul.f32.gmra.mxu0 %v41
  %v196 = vpop.f32.mrf.mxu0
  %v197 = vadd.f32 %v96, %v196
  %198 = vmatmul.f32.gmra.mxu0 %v42
  %v199 = vpop.f32.mrf.mxu0
  %v200 = vadd.f32 %v96, %v199
  %201 = vmatmul.f32.gmra.mxu0 %v43
  %v202 = vpop.f32.mrf.mxu0
  %v203 = vadd.f32 %v96, %v202
  %204 = vmatmul.f32.gmra.mxu0 %v44
  %v205 = vpop.f32.mrf.mxu0
  %v206 = vadd.f32 %v96, %v205
  %207 = vmatmul.f32.gmra.mxu0 %v45
  %v208 = vpop.f32.mrf.mxu0
  %v209 = vadd.f32 %v96, %v208
  %210 = vmatmul.f32.gmra.mxu0 %v46
  %v211 = vpop.f32.mrf.mxu0
  %v212 = vadd.f32 %v96, %v211
  %213 = vmatmul.f32.gmra.mxu0 %v47
  %v214 = vpop.f32.mrf.mxu0
  %v215 = vadd.f32 %v96, %v214
  %216 = vmatmul.f32.gmra.mxu0 %v48
  %v217 = vpop.f32.mrf.mxu0
  %v218 = vadd.f32 %v96, %v217
  %219 = vmatmul.f32.gmra.mxu0 %v49
  %v220 = vpop.f32.mrf.mxu0
  %v221 = vadd.f32 %v96, %v220
  %222 = vmatmul.f32.gmra.mxu0 %v50
  %v223 = vpop.f32.mrf.mxu0
  %v224 = vadd.f32 %v96, %v223
  %225 = vmatmul.f32.gmra.mxu0 %v51
  %v226 = vpop.f32.mrf.mxu0
  %v227 = vadd.f32 %v96, %v226
  %228 = vmatmul.f32.gmra.mxu0 %v52
  %v229 = vpop.f32.mrf.mxu0
  %v230 = vadd.f32 %v96, %v229
  %231 = vmatmul.f32.gmra.mxu0 %v53
  %v232 = vpop.f32.mrf.mxu0
  %v233 = vadd.f32 %v96, %v232
  %234 = vmatmul.f32.gmra.mxu0 %v54
  %v235 = vpop.f32.mrf.mxu0
  %v236 = vadd.f32 %v96, %v235
  %237 = vmatmul.f32.gmra.mxu0 %v55
  %v238 = vpop.f32.mrf.mxu0
  %v239 = vadd.f32 %v96, %v238
  %240 = vmatmul.f32.gmra.mxu0 %v56
  %v241 = vpop.f32.mrf.mxu0
  %v242 = vadd.f32 %v96, %v241
  %243 = vmatmul.f32.gmra.mxu0 %v57
  %v244 = vpop.f32.mrf.mxu0
  %v245 = vadd.f32 %v96, %v244
  %246 = vmatmul.f32.gmra.mxu0 %v58
  %v247 = vpop.f32.mrf.mxu0
  %v248 = vadd.f32 %v96, %v247
  %249 = vmatmul.f32.gmra.mxu0 %v59
  %v250 = vpop.f32.mrf.mxu0
  %v251 = vadd.f32 %v96, %v250
  %252 = vmatmul.f32.gmra.mxu0 %v60
  %v253 = vpop.f32.mrf.mxu0
  %v254 = vadd.f32 %v96, %v253
  %255 = vmatmul.f32.gmra.mxu0 %v61
  %v256 = vpop.f32.mrf.mxu0
  %v257 = vadd.f32 %v96, %v256
  %258 = vmatmul.f32.gmra.mxu0 %v62
  %v259 = vpop.f32.mrf.mxu0
  %v260 = vadd.f32 %v96, %v259
  %261 = vmatmul.f32.gmra.mxu0 %v63
  %v262 = vpop.f32.mrf.mxu0
  %v263 = vadd.f32 %v96, %v262
  %264 = vmatmul.f32.gmra.mxu0 %v64
  %v265 = vpop.f32.mrf.mxu0
  %v266 = vadd.f32 %v96, %v265
  %267 = vmatmul.f32.gmra.mxu0 %v65
  %v268 = vpop.f32.mrf.mxu0
  %v269 = vadd.f32 %v96, %v268
  %270 = vmatmul.f32.gmra.mxu0 %v66
  %v271 = vpop.f32.mrf.mxu0
  %v272 = vadd.f32 %v96, %v271
  %273 = vmatmul.f32.gmra.mxu0 %v67
  %v274 = vpop.f32.mrf.mxu0
  %v275 = vadd.f32 %v96, %v274
  %276 = vmatmul.f32.gmra.mxu0 %v68
  %v277 = vpop.f32.mrf.mxu0
  %v278 = vadd.f32 %v96, %v277
  %279 = vmatmul.f32.gmra.mxu0 %v69
  %v280 = vpop.f32.mrf.mxu0
  %v281 = vadd.f32 %v96, %v280
  %282 = vmatmul.f32.gmra.mxu0 %v70
  %v283 = vpop.f32.mrf.mxu0
  %v284 = vadd.f32 %v96, %v283
  %285 = vmatmul.f32.gmra.mxu0 %v71
  %v286 = vpop.f32.mrf.mxu0
  %v287 = vadd.f32 %v96, %v286
  %288 = vmatmul.f32.gmra.mxu0 %v72
  %v289 = vpop.f32.mrf.mxu0
  %v290 = vadd.f32 %v96, %v289
  %291 = vmatmul.f32.gmra.mxu0 %v73
  %v292 = vpop.f32.mrf.mxu0
  %v293 = vadd.f32 %v96, %v292
  %294 = vmatmul.f32.gmra.mxu0 %v74
  %v295 = vpop.f32.mrf.mxu0
  %v296 = vadd.f32 %v96, %v295
  %297 = vmatmul.f32.gmra.mxu0 %v75
  %v298 = vpop.f32.mrf.mxu0
  %v299 = vadd.f32 %v96, %v298
  %300 = vmatmul.f32.gmra.mxu0 %v76
  %v301 = vpop.f32.mrf.mxu0
  %v302 = vadd.f32 %v96, %v301
  %303 = vmatmul.f32.gmra.mxu0 %v77
  %v304 = vpop.f32.mrf.mxu0
  %v305 = vadd.f32 %v96, %v304
  %306 = vdwg.mxu0
  %307 = vst [vmem:[%s3] sm:$0xff] %v116
  %308 = vst [vmem:[%s3 + $0x8] sm:$0xff] %v119
  %309 = vst [vmem:[%s3 + $0x10] sm:$0xff] %v122
  %310 = vst [vmem:[%s3 + $0x18] sm:$0xff] %v125
  %311 = vst [vmem:[%s3 + $0x20] sm:$0xff] %v128
  %312 = vst [vmem:[%s3 + $0x28] sm:$0xff] %v131
  %313 = vst [vmem:[%s3 + $0x30] sm:$0xff] %v134
  %314 = vst [vmem:[%s3 + $0x38] sm:$0xff] %v137
  %315 = vst [vmem:[%s3 + $0x40] sm:$0xff] %v140
  %316 = vst [vmem:[%s3 + $0x48] sm:$0xff] %v143
  %317 = vst [vmem:[%s3 + $0x50] sm:$0xff] %v146
  %318 = vst [vmem:[%s3 + $0x58] sm:$0xff] %v149
  %319 = vst [vmem:[%s3 + $0x60] sm:$0xff] %v152
  %320 = vst [vmem:[%s3 + $0x68] sm:$0xff] %v155
  %321 = vst [vmem:[%s3 + $0x70] sm:$0xff] %v158
  %322 = vst [vmem:[%s3 + $0x78] sm:$0xff] %v161
  %323 = vst [vmem:[%s3 + $0x80] sm:$0xff] %v164
  %324 = vst [vmem:[%s3 + $0x88] sm:$0xff] %v167
  %325 = vst [vmem:[%s3 + $0x90] sm:$0xff] %v170
  %326 = vst [vmem:[%s3 + $0x98] sm:$0xff] %v173
  %327 = vst [vmem:[%s3 + $0xa0] sm:$0xff] %v176
  %328 = vst [vmem:[%s3 + $0xa8] sm:$0xff] %v179
  %329 = vst [vmem:[%s3 + $0xb0] sm:$0xff] %v182
  %330 = vst [vmem:[%s3 + $0xb8] sm:$0xff] %v185
  %331 = vst [vmem:[%s3 + $0xc0] sm:$0xff] %v188
  %332 = vst [vmem:[%s3 + $0xc8] sm:$0xff] %v191
  %333 = vst [vmem:[%s3 + $0xd0] sm:$0xff] %v194
  %334 = vst [vmem:[%s3 + $0xd8] sm:$0xff] %v197
  %335 = vst [vmem:[%s3 + $0xe0] sm:$0xff] %v200
  %336 = vst [vmem:[%s3 + $0xe8] sm:$0xff] %v203
  %337 = vst [vmem:[%s3 + $0xf0] sm:$0xff] %v206
  %338 = vst [vmem:[%s3 + $0xf8] sm:$0xff] %v209
  %339 = vst [vmem:[%s3 + $0x100] sm:$0xff] %v212
  %340 = vst [vmem:[%s3 + $0x108] sm:$0xff] %v215
  %341 = vst [vmem:[%s3 + $0x110] sm:$0xff] %v218
  %342 = vst [vmem:[%s3 + $0x118] sm:$0xff] %v221
  %343 = vst [vmem:[%s3 + $0x120] sm:$0xff] %v224
  %344 = vst [vmem:[%s3 + $0x128] sm:$0xff] %v227
  %345 = vst [vmem:[%s3 + $0x130] sm:$0xff] %v230
  %346 = vst [vmem:[%s3 + $0x138] sm:$0xff] %v233
  %347 = vst [vmem:[%s3 + $0x140] sm:$0xff] %v236
  %348 = vst [vmem:[%s3 + $0x148] sm:$0xff] %v239
  %349 = vst [vmem:[%s3 + $0x150] sm:$0xff] %v242
  %350 = vst [vmem:[%s3 + $0x158] sm:$0xff] %v245
  %351 = vst [vmem:[%s3 + $0x160] sm:$0xff] %v248
  %352 = vst [vmem:[%s3 + $0x168] sm:$0xff] %v251
  %353 = vst [vmem:[%s3 + $0x170] sm:$0xff] %v254
  %354 = vst [vmem:[%s3 + $0x178] sm:$0xff] %v257
  %355 = vst [vmem:[%s3 + $0x180] sm:$0xff] %v260
  %356 = vst [vmem:[%s3 + $0x188] sm:$0xff] %v263
  %357 = vst [vmem:[%s3 + $0x190] sm:$0xff] %v266
  %358 = vst [vmem:[%s3 + $0x198] sm:$0xff] %v269
  %359 = vst [vmem:[%s3 + $0x1a0] sm:$0xff] %v272
  %360 = vst [vmem:[%s3 + $0x1a8] sm:$0xff] %v275
  %361 = vst [vmem:[%s3 + $0x1b0] sm:$0xff] %v278
  %362 = vst [vmem:[%s3 + $0x1b8] sm:$0xff] %v281
  %363 = vst [vmem:[%s3 + $0x1c0] sm:$0xff] %v284
  %364 = vst [vmem:[%s3 + $0x1c8] sm:$0xff] %v287
  %365 = vst [vmem:[%s3 + $0x1d0] sm:$0xff] %v290
  %366 = vst [vmem:[%s3 + $0x1d8] sm:$0xff] %v293
  %367 = vst [vmem:[%s3 + $0x1e0] sm:$0xff] %v296
  %368 = vst [vmem:[%s3 + $0x1e8] sm:$0xff] %v299
  %369 = vst [vmem:[%s3 + $0x1f0] sm:$0xff] %v302
  %370 = vst [vmem:[%s3 + $0x1f8] sm:$0xff] %v305
  // Predicated region
  $region14: #{linear_forward.1} parent=0 // pred_check
    _
  $region15: #{linear_forward.1} parent=0 // pred_check_branch
    %372 = sbr.rel (0) target = $region17
  $region16: #{linear_forward.1} parent=0 // pred_region
    _
  $region17: #{linear_forward.1} parent=0 // pred_fallthru
    _
  // Predicated region
  $region18: #{linear_forward.1} parent=0 // pred_check
    _
  $region19: #{linear_forward.1} parent=0 // pred_check_branch
    %374 = sbr.rel (0) target = $region21
  $region20: #{linear_forward.1} parent=0 // pred_region
    _
  $region21: #{linear_forward.1} parent=0 // pred_fallthru
    _

</llo_original>
